<compile_context>
chip_gen: v6e
topology: v6e:2x2x1
jax: 0.10.0
libtpu: 0.0.40
codegen_flags: <defaults>
</compile_context>

<pallas_src>
import functools

import jax
import jax.numpy as jnp
from jax.experimental import pallas as pl

HIDDEN = 256
BN_EPS = 1e-5

# Row layout of the packed small-parameter slab (f32, shape [8, HIDDEN]):
#   0: b1   1: gamma   2: beta   3: b2   4: w3 row   5: [b3, 0, ...]   6-7: pad
_ROW_B1, _ROW_G, _ROW_BE, _ROW_B2, _ROW_W3, _ROW_B3 = 0, 1, 2, 3, 4, 5


def _use_bf16_affine() -> bool:
    """bf16 VPU path for the BN affine + ReLU only on v6e / v7x (v5e has no bf16 VPU)."""
    try:
        kind = jax.devices()[0].device_kind.lower()
    except Exception:
        return False
    return ("v6" in kind) or ("v7" in kind)


def critic_kernel(x_ref, w_ref, p_ref, o_ref, *, input_size, pad_in, bf16_affine):
    # In-kernel bf16 cast of the input (rides a free VPU slot; no wrapper convert op).
    xb = x_ref[...].astype(jnp.bfloat16)

    # Static slices of the packed bf16 weight slab: rows [0:input_size) = w1,
    # rows [pad_in : pad_in+HIDDEN) = w2 (pad_in is 16-row aligned for bf16 tiling).
    w1 = w_ref[0:input_size, :]
    w2 = w_ref[pad_in:pad_in + HIDDEN, :]

    # fc1 on the MXU: bf16 operands, f32 accumulate.
    h1 = jnp.dot(xb, w1, preferred_element_type=jnp.float32)
    h1 = h1 + p_ref[_ROW_B1:_ROW_B1 + 1, :]

    # BatchNorm1d, training mode (batch statistics over axis=0), affine folded into
    # one scale. Normalizing from d (= h1 - mean) kills h1 right after the subtract,
    # so only one [B,256] f32 value stays live through the reduction.
    mean = jnp.mean(h1, axis=0, keepdims=True)                       # [1,256] f32
    d = h1 - mean                                                    # h1 dead here
    var = jnp.mean(d * d, axis=0, keepdims=True)                     # two-pass variance
    s = p_ref[_ROW_G:_ROW_G + 1, :] * jax.lax.rsqrt(var + BN_EPS)    # gamma/std (EUP)
    beta = p_ref[_ROW_BE:_ROW_BE + 1, :]
    if bf16_affine:
        # v6e / v7x: bf16 VPU — halves the [B,256] elementwise footprint and removes
        # the standalone f32->bf16 convert before fc2.
        h1r = jnp.maximum(
            d.astype(jnp.bfloat16) * s.astype(jnp.bfloat16) + beta.astype(jnp.bfloat16),
            0.0)
    else:
        # v5e: no bf16 VPU/EUP; keep the affine in f32, cast once for the MXU.
        h1r = jnp.maximum(d * s + beta, 0.0).astype(jnp.bfloat16)

    # fc2 + ReLU (bf16 MXU, f32 accumulate; elementwise stays f32).
    h2 = jnp.dot(h1r, w2, preferred_element_type=jnp.float32)
    h2 = jnp.maximum(h2 + p_ref[_ROW_B2:_ROW_B2 + 1, :], 0.0)        # [B,256] f32

    # fc3 (out_features=1): 1-row MXU matmul contracted on the feature axis of BOTH
    # operands -> lane-dense (1, B) result, stored with a single unmasked vst.
    w3 = p_ref[_ROW_W3:_ROW_W3 + 1, :].astype(jnp.bfloat16)          # [1,256]
    out = jax.lax.dot_general(w3, h2.astype(jnp.bfloat16),
                              (((1,), (1,)), ((), ())),
                              preferred_element_type=jnp.float32)     # [1, B]
    o_ref[...] = (out + p_ref[_ROW_B3:_ROW_B3 + 1, 0:1]).astype(o_ref.dtype)


def _full_spec(shape):
    # Whole-array block, single grid point (BN batch stats require the full batch).
    return pl.BlockSpec(shape, lambda: tuple(0 for _ in shape))


def critic_forward(x, params):
    w_slab, p_slab = params
    B, input_size = x.shape
    pad_in = w_slab.shape[0] - HIDDEN

    kernel = functools.partial(critic_kernel, input_size=input_size, pad_in=pad_in,
                               bf16_affine=_use_bf16_affine())

    args = (x, w_slab, p_slab)
    cost = pl.CostEstimate(
        flops=2 * B * (input_size * HIDDEN + HIDDEN * HIDDEN + HIDDEN),
        transcendentals=HIDDEN,  # rsqrt over 256 features
        bytes_accessed=sum(int(a.size) * a.dtype.itemsize for a in args) + B * 4,
    )

    # TODO(synk): if this critic is called repeatedly with the same weights (typical RL
    # inner loop), keep the weight slab resident across calls via a cross-pallas_call
    # prefetch future (semaphore + VMEM ref outputs) instead of re-paying the ~144 KB
    # weight DMA each call; out of scope for this single-call script.
    out_row = pl.pallas_call(
        kernel,
        out_shape=jax.ShapeDtypeStruct((1, B), jnp.float32),
        in_specs=[_full_spec(a.shape) for a in args],
        out_specs=_full_spec((1, B)),
        cost_estimate=cost,
        # No grid over the batch axis (BN needs full-batch statistics); ~0.6 MiB of
        # VMEM total, well under every chip's scoped default, so no vmem override.
    )(*args)
    # (1, B) -> (B, 1): same contiguous layout, free metadata-only reshape in XLA.
    return out_row.reshape(B, 1)


def init_params(key, input_size):
    """Deterministic init mimicking the PyTorch module's reset_parameters()."""
    ks = jax.random.split(key, 6)

    # hidden_init uses weight.size()[0] == out_features (=256) for fc1/fc2.
    lim_w12 = 1.0 / jnp.sqrt(jnp.float32(HIDDEN))
    # PyTorch Linear default bias init: U(-1/sqrt(in_features), 1/sqrt(in_features)).
    lim_b1 = 1.0 / jnp.sqrt(jnp.float32(input_size))
    lim_b23 = 1.0 / jnp.sqrt(jnp.float32(HIDDEN))

    w1 = jax.random.uniform(ks[0], (input_size, HIDDEN), jnp.float32, -lim_w12, lim_w12)
    b1 = jax.random.uniform(ks[1], (HIDDEN,), jnp.float32, -lim_b1, lim_b1)
    w2 = jax.random.uniform(ks[2], (HIDDEN, HIDDEN), jnp.float32, -lim_w12, lim_w12)
    b2 = jax.random.uniform(ks[3], (HIDDEN,), jnp.float32, -lim_b23, lim_b23)
    w3 = jax.random.uniform(ks[4], (HIDDEN,), jnp.float32, -0.003, 0.003)
    b3 = jax.random.uniform(ks[5], (), jnp.float32, -lim_b23, lim_b23)

    # BatchNorm1d defaults: gamma=1, beta=0.
    gamma = jnp.ones((HIDDEN,), jnp.float32)
    beta = jnp.zeros((HIDDEN,), jnp.float32)

    # Single bf16 weight slab: rows [0:pad_in) hold w1 (zero-padded up to a 16-row
    # bf16 sublane-tile boundary), rows [pad_in : pad_in+HIDDEN) hold w2.
    pad_in = ((input_size + 15) // 16) * 16
    w_slab = jnp.zeros((pad_in + HIDDEN, HIDDEN), jnp.float32)
    w_slab = w_slab.at[:input_size].set(w1)
    w_slab = w_slab.at[pad_in:pad_in + HIDDEN].set(w2)
    w_slab = w_slab.astype(jnp.bfloat16)

    # Small per-layer vectors packed into a single [8, HIDDEN] f32 slab.
    p_slab = jnp.zeros((8, HIDDEN), jnp.float32)
    p_slab = p_slab.at[_ROW_B1].set(b1)
    p_slab = p_slab.at[_ROW_G].set(gamma)
    p_slab = p_slab.at[_ROW_BE].set(beta)
    p_slab = p_slab.at[_ROW_B2].set(b2)
    p_slab = p_slab.at[_ROW_W3].set(w3)
    p_slab = p_slab.at[_ROW_B3, 0].set(b3)

    return (w_slab, p_slab)


def critic_ref(x, params):
    """Pure-JAX reference following the same bf16-operand / f32-accumulate path."""
    w_slab, p = params
    input_size = x.shape[1]
    pad_in = w_slab.shape[0] - HIDDEN
    w1 = w_slab[:input_size]
    w2 = w_slab[pad_in:pad_in + HIDDEN]
    b1 = p[_ROW_B1:_ROW_B1 + 1]
    gamma = p[_ROW_G:_ROW_G + 1]
    beta = p[_ROW_BE:_ROW_BE + 1]
    b2 = p[_ROW_B2:_ROW_B2 + 1]
    w3 = p[_ROW_W3:_ROW_W3 + 1].astype(jnp.bfloat16)
    b3 = p[_ROW_B3, 0]

    h1 = jnp.dot(x.astype(jnp.bfloat16), w1, preferred_element_type=jnp.float32) + b1
    mean = jnp.mean(h1, axis=0, keepdims=True)
    d = h1 - mean
    var = jnp.mean(d * d, axis=0, keepdims=True)
    s = gamma * jax.lax.rsqrt(var + BN_EPS)
    if _use_bf16_affine():
        h1r = jnp.maximum(
            d.astype(jnp.bfloat16) * s.astype(jnp.bfloat16) + beta.astype(jnp.bfloat16),
            0.0)
    else:
        h1r = jnp.maximum(d * s + beta, 0.0).astype(jnp.bfloat16)
    h2 = jnp.dot(h1r, w2, preferred_element_type=jnp.float32) + b2
    h2 = jnp.maximum(h2, 0.0)
    out = jax.lax.dot_general(w3, h2.astype(jnp.bfloat16),
                              (((1,), (1,)), ((), ())),
                              preferred_element_type=jnp.float32)     # [1, B]
    return (out + b3).T                                               # [B, 1]


if __name__ == "__main__":
    key = jax.random.PRNGKey(0)
    k_x, k_p = jax.random.split(key)

    # B=128 so the MXU rows are actually used; single block (BN needs the whole batch).
    batch, input_size = 128, 32
    x = jax.random.normal(k_x, (batch, input_size), jnp.float32)
    params = init_params(k_p, input_size)

    out = jax.block_until_ready(critic_forward(x, params))
    ref = critic_ref(x, params)

    assert out.shape == (batch, 1)
    assert jnp.allclose(out, ref, atol=2e-3, rtol=2e-3), "mismatch vs reference"

    # TODO(synk): PyTorch training-mode BatchNorm also updates running_mean/running_var;
    # that stateful side effect does not affect this forward output and is not emitted.

    print("KERNEL_OK")
</pallas_src>

<mosaic_0001>
module attributes {stable_mosaic.version = 11 : i64} {
  func.func @critic_kernel(%arg0: memref<128x32xf32, #tpu.memory_space<vmem>>, %arg1: memref<288x256xbf16, #tpu.memory_space<vmem>>, %arg2: memref<8x256xf32, #tpu.memory_space<vmem>>, %arg3: memref<1x128xf32, #tpu.memory_space<vmem>>) attributes {dimension_semantics = [], scalar_prefetch = 0 : i64, scratch_operands = 0 : i64, tpu.core_type = #tpu.core_type<tc>} {
    %c0 = arith.constant 0 : index
    %c0_0 = arith.constant 0 : index
    %0 = vector.load %arg0[%c0, %c0_0] : memref<128x32xf32, #tpu.memory_space<vmem>>, vector<128x32xf32>
    %1 = arith.truncf %0 : vector<128x32xf32> to vector<128x32xbf16>
    %c0_1 = arith.constant 0 : index
    %c0_2 = arith.constant 0 : index
    %2 = vector.load %arg1[%c0_1, %c0_2] : memref<288x256xbf16, #tpu.memory_space<vmem>>, vector<32x256xbf16>
    %c32 = arith.constant 32 : index
    %c0_3 = arith.constant 0 : index
    %3 = vector.load %arg1[%c32, %c0_3] : memref<288x256xbf16, #tpu.memory_space<vmem>>, vector<256x256xbf16>
    %cst = arith.constant dense<0.000000e+00> : vector<128x256xf32>
    %4 = tpu.matmul %1, %2, %cst {dimension_numbers = #tpu.dot_dimension_numbers<[1], [0], [0], [1], [0, 0, 1, 1], [], []>} : vector<128x32xbf16>, vector<32x256xbf16>, vector<128x256xf32> -> vector<128x256xf32>
    %c0_4 = arith.constant 0 : index
    %c0_5 = arith.constant 0 : index
    %5 = vector.load %arg2[%c0_4, %c0_5] : memref<8x256xf32, #tpu.memory_space<vmem>>, vector<1x256xf32>
    %6 = vector.broadcast %5 : vector<1x256xf32> to vector<128x256xf32>
    %7 = arith.addf %4, %6 : vector<128x256xf32>
    %cst_6 = arith.constant dense<0.000000e+00> : vector<256xf32>
    %8 = vector.multi_reduction <add>, %7, %cst_6 [0] : vector<128x256xf32> to vector<256xf32>
    %9 = vector.shape_cast %8 : vector<256xf32> to vector<1x256xf32>
    %cst_7 = arith.constant 1.280000e+02 : f32
    %10 = vector.broadcast %cst_7 : f32 to vector<1x256xf32>
    %11 = arith.divf %9, %10 : vector<1x256xf32>
    %12 = vector.broadcast %11 : vector<1x256xf32> to vector<128x256xf32>
    %13 = arith.subf %7, %12 : vector<128x256xf32>
    %14 = arith.mulf %13, %13 : vector<128x256xf32>
    %cst_8 = arith.constant dense<0.000000e+00> : vector<256xf32>
    %15 = vector.multi_reduction <add>, %14, %cst_8 [0] : vector<128x256xf32> to vector<256xf32>
    %16 = vector.shape_cast %15 : vector<256xf32> to vector<1x256xf32>
    %cst_9 = arith.constant 1.280000e+02 : f32
    %17 = vector.broadcast %cst_9 : f32 to vector<1x256xf32>
    %18 = arith.divf %16, %17 : vector<1x256xf32>
    %c1 = arith.constant 1 : index
    %c0_10 = arith.constant 0 : index
    %19 = vector.load %arg2[%c1, %c0_10] : memref<8x256xf32, #tpu.memory_space<vmem>>, vector<1x256xf32>
    %cst_11 = arith.constant 9.99999974E-6 : f32
    %20 = vector.broadcast %cst_11 : f32 to vector<1x256xf32>
    %21 = arith.addf %18, %20 : vector<1x256xf32>
    %22 = math.rsqrt %21 : vector<1x256xf32>
    %23 = arith.mulf %19, %22 : vector<1x256xf32>
    %c2 = arith.constant 2 : index
    %c0_12 = arith.constant 0 : index
    %24 = vector.load %arg2[%c2, %c0_12] : memref<8x256xf32, #tpu.memory_space<vmem>>, vector<1x256xf32>
    %25 = vector.broadcast %23 : vector<1x256xf32> to vector<128x256xf32>
    %26 = arith.mulf %13, %25 : vector<128x256xf32>
    %27 = vector.broadcast %24 : vector<1x256xf32> to vector<128x256xf32>
    %28 = arith.addf %26, %27 : vector<128x256xf32>
    %cst_13 = arith.constant 0.000000e+00 : f32
    %29 = vector.broadcast %cst_13 : f32 to vector<128x256xf32>
    %30 = arith.maximumf %28, %29 : vector<128x256xf32>
    %31 = arith.truncf %30 : vector<128x256xf32> to vector<128x256xbf16>
    %cst_14 = arith.constant dense<0.000000e+00> : vector<128x256xf32>
    %32 = tpu.matmul %31, %3, %cst_14 {dimension_numbers = #tpu.dot_dimension_numbers<[1], [0], [0], [1], [0, 0, 1, 1], [], []>} : vector<128x256xbf16>, vector<256x256xbf16>, vector<128x256xf32> -> vector<128x256xf32>
    %c3 = arith.constant 3 : index
    %c0_15 = arith.constant 0 : index
    %33 = vector.load %arg2[%c3, %c0_15] : memref<8x256xf32, #tpu.memory_space<vmem>>, vector<1x256xf32>
    %34 = vector.broadcast %33 : vector<1x256xf32> to vector<128x256xf32>
    %35 = arith.addf %32, %34 : vector<128x256xf32>
    %cst_16 = arith.constant 0.000000e+00 : f32
    %36 = vector.broadcast %cst_16 : f32 to vector<128x256xf32>
    %37 = arith.maximumf %35, %36 : vector<128x256xf32>
    %c4 = arith.constant 4 : index
    %c0_17 = arith.constant 0 : index
    %38 = vector.load %arg2[%c4, %c0_17] : memref<8x256xf32, #tpu.memory_space<vmem>>, vector<1x256xf32>
    %39 = arith.truncf %38 : vector<1x256xf32> to vector<1x256xbf16>
    %40 = arith.truncf %37 : vector<128x256xf32> to vector<128x256xbf16>
    %cst_18 = arith.constant dense<0.000000e+00> : vector<1x128xf32>
    %41 = tpu.matmul %39, %40, %cst_18 {dimension_numbers = #tpu.dot_dimension_numbers<[1], [1], [0], [0], [0, 0, 1, 0], [], []>} : vector<1x256xbf16>, vector<128x256xbf16>, vector<1x128xf32> -> vector<1x128xf32>
    %c5 = arith.constant 5 : index
    %c0_19 = arith.constant 0 : index
    %42 = vector.load %arg2[%c5, %c0_19] : memref<8x256xf32, #tpu.memory_space<vmem>>, vector<1x1xf32>
    %43 = vector.broadcast %42 : vector<1x1xf32> to vector<1x128xf32>
    %44 = arith.addf %41, %43 : vector<1x128xf32>
    %c0_20 = arith.constant 0 : index
    %c0_21 = arith.constant 0 : index
    %45 = vector.load %arg3[%c0_20, %c0_21] : memref<1x128xf32, #tpu.memory_space<vmem>>, vector<1x128xf32>
    tpu.vector_store %arg3[%c0_20, %c0_21], %44 {strides = array<i32>} : memref<1x128xf32, #tpu.memory_space<vmem>>, vector<1x128xf32>,
    return
  }
}

</mosaic_0001>

<llo_original>
// kernel: tpu_custom_call.1
$region0: #{tpu_custom_call.1}
  #allocation0 [shape = 'u32[]', space=smem, size = 0x4, offset = 0x4, fixed_abs, tag = 'smem constant byte address 0x4 - core index']
  #allocation1 [shape = 'u32[144,128]{1,0:T(1,128)}', space=vmem, size = 0x12000, scoped, tag = 'internal scratch']
  %s0 = inlined_call_operand.vmem [shape: f32[128,32], index: 0, kind: input, shape index: {}]
  %s1 = inlined_call_operand.hbm [shape: bf16[288,256], index: 1, kind: input, shape index: {}]
  %s2 = inlined_call_operand.vmem [shape: f32[8,256], index: 2, kind: input, shape index: {}]
  %s3 = inlined_call_operand.hbm [shape: f32[1,128], index: 3, kind: output, shape index: {}]
  %s4 = sld [smem:[#allocation0]]
  $region26: #{tpu_custom_call.1} parent=0
    _
  %s6 = ssub.s32 1, %s4
  %s7 = scalar_select 0, %s6, %s4
  $region1: #{tpu_custom_call.1} parent=0
    #allocation2 [shape = 'u8[147456]{0}', space=vmem, size = 0x24000, scoped, tag = 'input window, operand 1, single buffered']
    #allocation3 [shape = 's32[1]{0}', space=sflag, size = 0x4, scoped, tag = 'scoped memory for tpu_custom_call.1']
    #allocation4 [shape = 's32[1]{0}', space=sflag, size = 0x4, scoped, tag = 'scoped memory for tpu_custom_call.1']
    #allocation5 [shape = 'u8[512]{0}', space=vmem, size = 0x400, scoped, tag = 'output window, operand 0, single buffered']
    %8 = vsyncpa [#allocation3], 0
    %9 = vsyncpa [#allocation4], 0
    // Predicated region
    $region2: #{tpu_custom_call.1} parent=1 // pred_check
      _
    $region3: #{tpu_custom_call.1} parent=1 // pred_check_branch
      %11 = sbr.rel (0) target = $region5
    $region4: #{tpu_custom_call.1} parent=1 // pred_region
      _
    $region5: #{tpu_custom_call.1} parent=1 // pred_fallthru
      _
    // Predicated region
    $region6: #{tpu_custom_call.1} parent=1 // pred_check
      _
    $region7: #{tpu_custom_call.1} parent=1 // pred_check_branch
      %13 = sbr.rel (0) target = $region9
    $region8: #{tpu_custom_call.1} parent=1 // pred_region
      %s15 = ssub.s32 4608, 4608
      %16 = vsyncadd [#allocation3], %s15
      %s17 = sshll.u32 [#allocation2], 4
      %s18 = int_to_ptr.vmem [resolvable:$true] %s17
      %23 = dma.hbm_to_vmem [thread:$0]  %s1, 4608, %s18, [#allocation3], 128, 128, 8
    $region9: #{tpu_custom_call.1} parent=1 // pred_fallthru
      _
    // Predicated region
    $region10: #{tpu_custom_call.1} parent=1 // pred_check
      _
    $region11: #{tpu_custom_call.1} parent=1 // pred_check_branch
      %25 = sbr.rel (0) target = $region13
    $region12: #{tpu_custom_call.1} parent=1 // pred_region
      _
    $region13: #{tpu_custom_call.1} parent=1 // pred_fallthru
      _
    // Predicated region
    $region14: #{tpu_custom_call.1} parent=1 // pred_check
      _
    $region15: #{tpu_custom_call.1} parent=1 // pred_check_branch
      %27 = sbr.rel (0) target = $region17
    $region16: #{tpu_custom_call.1} parent=1 // pred_region
      %28 = dma.done [#allocation3], 4608
    $region17: #{tpu_custom_call.1} parent=1 // pred_fallthru
      _
    %v30 = vld [vmem:[%s0] sm:$0xff]
    %v31 = vld [vmem:[%s0 + $0x8] sm:$0xff]
    %v32 = vld [vmem:[%s0 + $0x10] sm:$0xff]
    %v33 = vld [vmem:[%s0 + $0x18] sm:$0xff]
    %v34 = vld [vmem:[%s0 + $0x20] sm:$0xff]
    %v35 = vld [vmem:[%s0 + $0x28] sm:$0xff]
    %v36 = vld [vmem:[%s0 + $0x30] sm:$0xff]
    %v37 = vld [vmem:[%s0 + $0x38] sm:$0xff]
    %v38 = vld [vmem:[%s0 + $0x40] sm:$0xff]
    %v39 = vld [vmem:[%s0 + $0x48] sm:$0xff]
    %v40 = vld [vmem:[%s0 + $0x50] sm:$0xff]
    %v41 = vld [vmem:[%s0 + $0x58] sm:$0xff]
    %v42 = vld [vmem:[%s0 + $0x60] sm:$0xff]
    %v43 = vld [vmem:[%s0 + $0x68] sm:$0xff]
    %v44 = vld [vmem:[%s0 + $0x70] sm:$0xff]
    %v45 = vld [vmem:[%s0 + $0x78] sm:$0xff]
    %v46 = vpack.c.bf16 %v31, %v30
    %v47 = vpack.c.bf16 %v33, %v32
    %v48 = vpack.c.bf16 %v35, %v34
    %v49 = vpack.c.bf16 %v37, %v36
    %v50 = vpack.c.bf16 %v39, %v38
    %v51 = vpack.c.bf16 %v41, %v40
    %v52 = vpack.c.bf16 %v43, %v42
    %v53 = vpack.c.bf16 %v45, %v44
    %v54 = vld [vmem:[#allocation2] sm:$0xff]
    %v55 = vld [vmem:[#allocation2 + $0x8] sm:$0xff]
    %v56 = vld [vmem:[#allocation2 + $0x10] sm:$0xff]
    %v57 = vld [vmem:[#allocation2 + $0x18] sm:$0xff]
    %v58 = vld [vmem:[#allocation2 + $0x20] sm:$0xff]
    %v59 = vld [vmem:[#allocation2 + $0x28] sm:$0xff]
    %v60 = vld [vmem:[#allocation2 + $0x30] sm:$0xff]
    %v61 = vld [vmem:[#allocation2 + $0x38] sm:$0xff]
    %v62 = vld [vmem:[#allocation2 + $0x40] sm:$0xff]
    %v63 = vld [vmem:[#allocation2 + $0x48] sm:$0xff]
    %v64 = vld [vmem:[#allocation2 + $0x50] sm:$0xff]
    %v65 = vld [vmem:[#allocation2 + $0x58] sm:$0xff]
    %v66 = vld [vmem:[#allocation2 + $0x60] sm:$0xff]
    %v67 = vld [vmem:[#allocation2 + $0x68] sm:$0xff]
    %v68 = vld [vmem:[#allocation2 + $0x70] sm:$0xff]
    %v69 = vld [vmem:[#allocation2 + $0x78] sm:$0xff]
    %v70 = vld [vmem:[#allocation2 + $0x80] sm:$0xff]
    %v71 = vld [vmem:[#allocation2 + $0x88] sm:$0xff]
    %v72 = vld [vmem:[#allocation2 + $0x90] sm:$0xff]
    %v73 = vld [vmem:[#allocation2 + $0x98] sm:$0xff]
    %v74 = vld [vmem:[#allocation2 + $0xa0] sm:$0xff]
    %v75 = vld [vmem:[#allocation2 + $0xa8] sm:$0xff]
    %v76 = vld [vmem:[#allocation2 + $0xb0] sm:$0xff]
    %v77 = vld [vmem:[#allocation2 + $0xb8] sm:$0xff]
    %v78 = vld [vmem:[#allocation2 + $0xc0] sm:$0xff]
    %v79 = vld [vmem:[#allocation2 + $0xc8] sm:$0xff]
    %v80 = vld [vmem:[#allocation2 + $0xd0] sm:$0xff]
    %v81 = vld [vmem:[#allocation2 + $0xd8] sm:$0xff]
    %v82 = vld [vmem:[#allocation2 + $0xe0] sm:$0xff]
    %v83 = vld [vmem:[#allocation2 + $0xe8] sm:$0xff]
    %v84 = vld [vmem:[#allocation2 + $0xf0] sm:$0xff]
    %v85 = vld [vmem:[#allocation2 + $0xf8] sm:$0xff]
    %v86 = vld [vmem:[#allocation2 + $0x100] sm:$0xff]
    %v87 = vld [vmem:[#allocation2 + $0x108] sm:$0xff]
    %v88 = vld [vmem:[#allocation2 + $0x110] sm:$0xff]
    %v89 = vld [vmem:[#allocation2 + $0x118] sm:$0xff]
    %v90 = vld [vmem:[%s2] ss:$8 sm:$0x3]
    %v92 = vlaneseq
    %v93 = vshrl.u32 %v92, 7
    %v94 = vsub.s32 0, %v93
    %v95 = vrot.slane %v90, %v94
    %v96 = vlaneseq
    %v97 = vshrl.u32 %v96, 7
    %v98 = vsub.s32 1, %v97
    %v99 = vrot.slane %v90, %v98
    %v106 = vunpack.c.l.b16 %v54
    %v107 = vunpack.c.h.b16 %v54
    %v108 = vunpack.c.l.b16 %v55
    %v109 = vunpack.c.h.b16 %v55
    %v110 = vunpack.c.l.b16 %v56
    %v111 = vunpack.c.h.b16 %v56
    %v112 = vunpack.c.l.b16 %v57
    %v113 = vunpack.c.h.b16 %v57
    %v114 = vpack.c.b16 %v108, %v106
    %v115 = vpack.c.b16 %v109, %v107
    %v116 = vpack.c.b16 %v112, %v110
    %v117 = vpack.c.b16 %v113, %v111
    %vm122 = vcmask 261120
    %v124 = vsel %vm122, %v46, 0
    %v127 = vsel %vm122, %v47, 0
    %v130 = vsel %vm122, %v48, 0
    %v133 = vsel %vm122, %v49, 0
    %v136 = vsel %vm122, %v50, 0
    %v139 = vsel %vm122, %v51, 0
    %v142 = vsel %vm122, %v52, 0
    %v145 = vsel %vm122, %v53, 0
    %147 = vmatprep.subr.bf16.mxu0 0
    %148 = vmatpush1.bf16.msra.mxu0 0
    %149 = vmatprep.subr.bf16.mxu0 0
    %150 = vmatpush1.bf16.msra.mxu0 0
    %151 = vmatprep.subr.bf16.mxu0 0
    %152 = vmatpush1.bf16.msra.mxu0 0
    %153 = vmatprep.subr.bf16.mxu0 0
    %154 = vmatpush1.bf16.msra.mxu0 0
    %155 = vmatprep.subr.bf16.mxu0 0
    %156 = vmatpush1.bf16.msra.mxu0 0
    %157 = vmatprep.subr.bf16.mxu0 0
    %158 = vmatpush1.bf16.msra.mxu0 0
    %159 = vmatprep.subr.bf16.mxu0 %v117
    %160 = vmatpush1.bf16.msra.mxu0 %v116
    %161 = vmatprep.subr.bf16.mxu0 %v115
    %162 = vmatpush1.bf16.msra.mxu0 %v114
    %163 = vmatprep.subr.bf16.mxu0 0
    %164 = vmatpush2.bf16.msra.mxu0 0
    %165 = vmatprep.subr.bf16.mxu0 0
    %166 = vmatpush2.bf16.msra.mxu0 0
    %167 = vmatprep.subr.bf16.mxu0 0
    %168 = vmatpush2.bf16.msra.mxu0 0
    %169 = vmatprep.subr.bf16.mxu0 0
    %170 = vmatpush2.bf16.msra.mxu0 0
    %171 = vmatprep.subr.bf16.mxu0 0
    %172 = vmatpush2.bf16.msra.mxu0 0
    %173 = vmatprep.subr.bf16.mxu0 0
    %174 = vmatpush2.bf16.msra.mxu0 0
    %175 = vmatprep.subr.bf16.mxu0 0
    %176 = vmatpush2.bf16.msra.mxu0 0
    %177 = vmatprep.subr.bf16.mxu0 0
    %178 = vmatpush2.bf16.msra.mxu0 0
    %179 = vmatprep.mubr.bf16.mxu0 0
    %180 = vmatmul.mubr.bf16.gmra.mxu0 %v124
    %v181 = vpop.f32.mrf.mxu0
    %v182 = vadd.f32 %v95, %v181
    %v183 = vpop.f32.mrf.mxu0
    %v184 = vadd.f32 %v99, %v183
    %v185 = vpop.f32.mrf.mxu0
    %v186 = vadd.f32 %v95, %v185
    %v187 = vpop.f32.mrf.mxu0
    %v188 = vadd.f32 %v99, %v187
    %189 = vmatprep.mubr.bf16.mxu0 0
    %190 = vmatmul.mubr.bf16.gmra.mxu0 %v127
    %v191 = vpop.f32.mrf.mxu0
    %v192 = vadd.f32 %v95, %v191
    %v193 = vpop.f32.mrf.mxu0
    %v194 = vadd.f32 %v99, %v193
    %v195 = vpop.f32.mrf.mxu0
    %v196 = vadd.f32 %v95, %v195
    %v197 = vpop.f32.mrf.mxu0
    %v198 = vadd.f32 %v99, %v197
    %199 = vmatprep.mubr.bf16.mxu0 0
    %200 = vmatmul.mubr.bf16.gmra.mxu0 %v130
    %v201 = vpop.f32.mrf.mxu0
    %v202 = vadd.f32 %v95, %v201
    %v203 = vpop.f32.mrf.mxu0
    %v204 = vadd.f32 %v99, %v203
    %v205 = vpop.f32.mrf.mxu0
    %v206 = vadd.f32 %v95, %v205
    %v207 = vpop.f32.mrf.mxu0
    %v208 = vadd.f32 %v99, %v207
    %209 = vmatprep.mubr.bf16.mxu0 0
    %210 = vmatmul.mubr.bf16.gmra.mxu0 %v133
    %v211 = vpop.f32.mrf.mxu0
    %v212 = vadd.f32 %v95, %v211
    %v213 = vpop.f32.mrf.mxu0
    %v214 = vadd.f32 %v99, %v213
    %v215 = vpop.f32.mrf.mxu0
    %v216 = vadd.f32 %v95, %v215
    %v217 = vpop.f32.mrf.mxu0
    %v218 = vadd.f32 %v99, %v217
    %219 = vmatprep.mubr.bf16.mxu0 0
    %220 = vmatmul.mubr.bf16.gmra.mxu0 %v136
    %v221 = vpop.f32.mrf.mxu0
    %v222 = vadd.f32 %v95, %v221
    %v223 = vpop.f32.mrf.mxu0
    %v224 = vadd.f32 %v99, %v223
    %v225 = vpop.f32.mrf.mxu0
    %v226 = vadd.f32 %v95, %v225
    %v227 = vpop.f32.mrf.mxu0
    %v228 = vadd.f32 %v99, %v227
    %229 = vmatprep.mubr.bf16.mxu0 0
    %230 = vmatmul.mubr.bf16.gmra.mxu0 %v139
    %v231 = vpop.f32.mrf.mxu0
    %v232 = vadd.f32 %v95, %v231
    %v233 = vpop.f32.mrf.mxu0
    %v234 = vadd.f32 %v99, %v233
    %v235 = vpop.f32.mrf.mxu0
    %v236 = vadd.f32 %v95, %v235
    %v237 = vpop.f32.mrf.mxu0
    %v238 = vadd.f32 %v99, %v237
    %239 = vmatprep.mubr.bf16.mxu0 0
    %240 = vmatmul.mubr.bf16.gmra.mxu0 %v142
    %v241 = vpop.f32.mrf.mxu0
    %v242 = vadd.f32 %v95, %v241
    %v243 = vpop.f32.mrf.mxu0
    %v244 = vadd.f32 %v99, %v243
    %v245 = vpop.f32.mrf.mxu0
    %v246 = vadd.f32 %v95, %v245
    %v247 = vpop.f32.mrf.mxu0
    %v248 = vadd.f32 %v99, %v247
    %249 = vmatprep.mubr.bf16.mxu0 0
    %250 = vmatmul.mubr.bf16.gmra.mxu0 %v145
    %v251 = vpop.f32.mrf.mxu0
    %v252 = vadd.f32 %v95, %v251
    %v253 = vpop.f32.mrf.mxu0
    %v254 = vadd.f32 %v99, %v253
    %v255 = vpop.f32.mrf.mxu0
    %v256 = vadd.f32 %v95, %v255
    %v257 = vpop.f32.mrf.mxu0
    %v258 = vadd.f32 %v99, %v257
    %259 = vdwg.mxu0
    %v260 = vadd.f32 %v182, %v186
    %v261 = vadd.f32 %v260, %v192
    %v262 = vadd.f32 %v261, %v196
    %v263 = vadd.f32 %v262, %v202
    %v264 = vadd.f32 %v263, %v206
    %v265 = vadd.f32 %v264, %v212
    %v266 = vadd.f32 %v265, %v216
    %v267 = vadd.f32 %v266, %v222
    %v268 = vadd.f32 %v267, %v226
    %v269 = vadd.f32 %v268, %v232
    %v270 = vadd.f32 %v269, %v236
    %v271 = vadd.f32 %v270, %v242
    %v272 = vadd.f32 %v271, %v246
    %v273 = vadd.f32 %v272, %v252
    %v274 = vadd.f32 %v273, %v256
    %v275 = vrot.slane %v274, 4
    %v276 = vadd.f32 %v274, %v275
    %v277 = vrot.slane %v276, 2
    %v278 = vadd.f32 %v276, %v277
    %v279 = vrot.slane %v278, 1
    %v280 = vadd.f32 %v278, %v279
    %v281 = vadd.f32 %v184, %v188
    %v282 = vadd.f32 %v281, %v194
    %v283 = vadd.f32 %v282, %v198
    %v284 = vadd.f32 %v283, %v204
    %v285 = vadd.f32 %v284, %v208
    %v286 = vadd.f32 %v285, %v214
    %v287 = vadd.f32 %v286, %v218
    %v288 = vadd.f32 %v287, %v224
    %v289 = vadd.f32 %v288, %v228
    %v290 = vadd.f32 %v289, %v234
    %v291 = vadd.f32 %v290, %v238
    %v292 = vadd.f32 %v291, %v244
    %v293 = vadd.f32 %v292, %v248
    %v294 = vadd.f32 %v293, %v254
    %v295 = vadd.f32 %v294, %v258
    %v296 = vrot.slane %v295, 4
    %v297 = vadd.f32 %v295, %v296
    %v298 = vrot.slane %v297, 2
    %v299 = vadd.f32 %v297, %v298
    %v300 = vrot.slane %v299, 1
    %v301 = vadd.f32 %v299, %v300
    %v302 = vrcp.pop 128.0
    %v303 = vmul.f32 %v280, %v302
    %v304 = vmul.f32 %v301, %v302
    %v305 = vsub.f32 %v182, %v303
    %v306 = vsub.f32 %v184, %v304
    %v307 = vsub.f32 %v186, %v303
    %v308 = vsub.f32 %v188, %v304
    %v309 = vsub.f32 %v192, %v303
    %v310 = vsub.f32 %v194, %v304
    %v311 = vsub.f32 %v196, %v303
    %v312 = vsub.f32 %v198, %v304
    %v313 = vsub.f32 %v202, %v303
    %v314 = vsub.f32 %v204, %v304
    %v315 = vsub.f32 %v206, %v303
    %v316 = vsub.f32 %v208, %v304
    %v317 = vsub.f32 %v212, %v303
    %v318 = vsub.f32 %v214, %v304
    %v319 = vsub.f32 %v216, %v303
    %v320 = vsub.f32 %v218, %v304
    %v321 = vsub.f32 %v222, %v303
    %v322 = vsub.f32 %v224, %v304
    %v323 = vsub.f32 %v226, %v303
    %v324 = vsub.f32 %v228, %v304
    %v325 = vsub.f32 %v232, %v303
    %v326 = vsub.f32 %v234, %v304
    %v327 = vsub.f32 %v236, %v303
    %v328 = vsub.f32 %v238, %v304
    %v329 = vsub.f32 %v242, %v303
    %v330 = vsub.f32 %v244, %v304
    %v331 = vsub.f32 %v246, %v303
    %v332 = vsub.f32 %v248, %v304
    %v333 = vsub.f32 %v252, %v303
    %v334 = vsub.f32 %v254, %v304
    %v335 = vsub.f32 %v256, %v303
    %v336 = vsub.f32 %v258, %v304
    %v337 = vmul.f32 %v305, %v305
    %v338 = vmul.f32 %v306, %v306
    %v339 = vmul.f32 %v307, %v307
    %v340 = vmul.f32 %v308, %v308
    %v341 = vmul.f32 %v309, %v309
    %v342 = vmul.f32 %v310, %v310
    %v343 = vmul.f32 %v311, %v311
    %v344 = vmul.f32 %v312, %v312
    %v345 = vmul.f32 %v313, %v313
    %v346 = vmul.f32 %v314, %v314
    %v347 = vmul.f32 %v315, %v315
    %v348 = vmul.f32 %v316, %v316
    %v349 = vmul.f32 %v317, %v317
    %v350 = vmul.f32 %v318, %v318
    %v351 = vmul.f32 %v319, %v319
    %v352 = vmul.f32 %v320, %v320
    %v353 = vmul.f32 %v321, %v321
    %v354 = vmul.f32 %v322, %v322
    %v355 = vmul.f32 %v323, %v323
    %v356 = vmul.f32 %v324, %v324
    %v357 = vmul.f32 %v325, %v325
    %v358 = vmul.f32 %v326, %v326
    %v359 = vmul.f32 %v327, %v327
    %v360 = vmul.f32 %v328, %v328
    %v361 = vmul.f32 %v329, %v329
    %v362 = vmul.f32 %v330, %v330
    %v363 = vmul.f32 %v331, %v331
    %v364 = vmul.f32 %v332, %v332
    %v365 = vmul.f32 %v333, %v333
    %v366 = vmul.f32 %v334, %v334
    %v367 = vmul.f32 %v335, %v335
    %v368 = vmul.f32 %v336, %v336
    %v369 = vadd.f32 %v337, %v339
    %v370 = vadd.f32 %v369, %v341
    %v371 = vadd.f32 %v370, %v343
    %v372 = vadd.f32 %v371, %v345
    %v373 = vadd.f32 %v372, %v347
    %v374 = vadd.f32 %v373, %v349
    %v375 = vadd.f32 %v374, %v351
    %v376 = vadd.f32 %v375, %v353
    %v377 = vadd.f32 %v376, %v355
    %v378 = vadd.f32 %v377, %v357
    %v379 = vadd.f32 %v378, %v359
    %v380 = vadd.f32 %v379, %v361
    %v381 = vadd.f32 %v380, %v363
    %v382 = vadd.f32 %v381, %v365
    %v383 = vadd.f32 %v382, %v367
    %v384 = vrot.slane %v383, 4
    %v385 = vadd.f32 %v383, %v384
    %v386 = vrot.slane %v385, 2
    %v387 = vadd.f32 %v385, %v386
    %v388 = vrot.slane %v387, 1
    %v389 = vadd.f32 %v387, %v388
    %v390 = vadd.f32 %v338, %v340
    %v391 = vadd.f32 %v390, %v342
    %v392 = vadd.f32 %v391, %v344
    %v393 = vadd.f32 %v392, %v346
    %v394 = vadd.f32 %v393, %v348
    %v395 = vadd.f32 %v394, %v350
    %v396 = vadd.f32 %v395, %v352
    %v397 = vadd.f32 %v396, %v354
    %v398 = vadd.f32 %v397, %v356
    %v399 = vadd.f32 %v398, %v358
    %v400 = vadd.f32 %v399, %v360
    %v401 = vadd.f32 %v400, %v362
    %v402 = vadd.f32 %v401, %v364
    %v403 = vadd.f32 %v402, %v366
    %v404 = vadd.f32 %v403, %v368
    %v405 = vrot.slane %v404, 4
    %v406 = vadd.f32 %v404, %v405
    %v407 = vrot.slane %v406, 2
    %v408 = vadd.f32 %v406, %v407
    %v409 = vrot.slane %v408, 1
    %v410 = vadd.f32 %v408, %v409
    %v411 = vmul.f32 %v389, %v302
    %v412 = vmul.f32 %v410, %v302
    %s413 = scalar_lea.vmem %s2, 1
    %v414 = vld [vmem:[%s413] ss:$8 sm:$0x3]
    %v415 = vadd.f32 %v411, 1e-05
    %v416 = vadd.f32 %v412, 1e-05
    %v417 = vrsqrt.pop %v415
    %v418 = vrsqrt.pop %v416
    %v421 = vcombine.low %v417, %v418
    %v423 = vunpack.c.l.s4 1966171168
    %v424 = vunpack.c.0.s8 %v423
    %v425 = vlaneseq
    %v426 = vshrl.u32 %v425, 7
    %v427 = vsub.s32 %v424, %v426
    %v428 = vrot.slane %v421, %v427
    %v430 = vunpack.c.l.s4 1966171168
    %v431 = vunpack.c.0.s8 %v430
    %v432 = vlaneseq
    %v433 = vshrl.u32 %v432, 7
    %v434 = vsub.s32 %v431, %v433
    %v435 = vrot.slane %v428, %v434
    %v437 = vmul.f32 %v414, %v435
    %s438 = scalar_lea.vmem %s2, 2
    %v439 = vld [vmem:[%s438] ss:$8 sm:$0x3]
    %v441 = vlaneseq
    %v442 = vshrl.u32 %v441, 7
    %v443 = vsub.s32 0, %v442
    %v444 = vrot.slane %v437, %v443
    %v445 = vlaneseq
    %v446 = vshrl.u32 %v445, 7
    %v447 = vsub.s32 1, %v446
    %v448 = vrot.slane %v437, %v447
    %v451 = vmul.f32 %v305, %v444
    %v452 = vmul.f32 %v306, %v448
    %v453 = vmul.f32 %v307, %v444
    %v454 = vmul.f32 %v308, %v448
    %v455 = vmul.f32 %v309, %v444
    %v456 = vmul.f32 %v310, %v448
    %v457 = vmul.f32 %v311, %v444
    %v458 = vmul.f32 %v312, %v448
    %v459 = vmul.f32 %v313, %v444
    %v460 = vmul.f32 %v314, %v448
    %v461 = vmul.f32 %v315, %v444
    %v462 = vmul.f32 %v316, %v448
    %v463 = vmul.f32 %v317, %v444
    %v464 = vmul.f32 %v318, %v448
    %v465 = vmul.f32 %v319, %v444
    %v466 = vmul.f32 %v320, %v448
    %v467 = vmul.f32 %v321, %v444
    %v468 = vmul.f32 %v322, %v448
    %v469 = vmul.f32 %v323, %v444
    %v470 = vmul.f32 %v324, %v448
    %v471 = vmul.f32 %v325, %v444
    %v472 = vmul.f32 %v326, %v448
    %v473 = vmul.f32 %v327, %v444
    %v474 = vmul.f32 %v328, %v448
    %v475 = vmul.f32 %v329, %v444
    %v476 = vmul.f32 %v330, %v448
    %v477 = vmul.f32 %v331, %v444
    %v478 = vmul.f32 %v332, %v448
    %v479 = vmul.f32 %v333, %v444
    %v480 = vmul.f32 %v334, %v448
    %v481 = vmul.f32 %v335, %v444
    %v482 = vmul.f32 %v336, %v448
    %v484 = vlaneseq
    %v485 = vshrl.u32 %v484, 7
    %v486 = vsub.s32 0, %v485
    %v487 = vrot.slane %v439, %v486
    %v488 = vlaneseq
    %v489 = vshrl.u32 %v488, 7
    %v490 = vsub.s32 1, %v489
    %v491 = vrot.slane %v439, %v490
    %v494 = vadd.f32 %v451, %v487
    %v495 = vadd.f32 %v452, %v491
    %v496 = vadd.f32 %v453, %v487
    %v497 = vadd.f32 %v454, %v491
    %v498 = vadd.f32 %v455, %v487
    %v499 = vadd.f32 %v456, %v491
    %v500 = vadd.f32 %v457, %v487
    %v501 = vadd.f32 %v458, %v491
    %v502 = vadd.f32 %v459, %v487
    %v503 = vadd.f32 %v460, %v491
    %v504 = vadd.f32 %v461, %v487
    %v505 = vadd.f32 %v462, %v491
    %v506 = vadd.f32 %v463, %v487
    %v507 = vadd.f32 %v464, %v491
    %v508 = vadd.f32 %v465, %v487
    %v509 = vadd.f32 %v466, %v491
    %v510 = vadd.f32 %v467, %v487
    %v511 = vadd.f32 %v468, %v491
    %v512 = vadd.f32 %v469, %v487
    %v513 = vadd.f32 %v470, %v491
    %v514 = vadd.f32 %v471, %v487
    %v515 = vadd.f32 %v472, %v491
    %v516 = vadd.f32 %v473, %v487
    %v517 = vadd.f32 %v474, %v491
    %v518 = vadd.f32 %v475, %v487
    %v519 = vadd.f32 %v476, %v491
    %v520 = vadd.f32 %v477, %v487
    %v521 = vadd.f32 %v478, %v491
    %v522 = vadd.f32 %v479, %v487
    %v523 = vadd.f32 %v480, %v491
    %v524 = vadd.f32 %v481, %v487
    %v525 = vadd.f32 %v482, %v491
    %v526 = vmax.f32 %v494, 0.0
    %v527 = vmax.f32 %v495, 0.0
    %v528 = vmax.f32 %v496, 0.0
    %v529 = vmax.f32 %v497, 0.0
    %v530 = vmax.f32 %v498, 0.0
    %v531 = vmax.f32 %v499, 0.0
    %v532 = vmax.f32 %v500, 0.0
    %v533 = vmax.f32 %v501, 0.0
    %v534 = vmax.f32 %v502, 0.0
    %v535 = vmax.f32 %v503, 0.0
    %v536 = vmax.f32 %v504, 0.0
    %v537 = vmax.f32 %v505, 0.0
    %v538 = vmax.f32 %v506, 0.0
    %v539 = vmax.f32 %v507, 0.0
    %v540 = vmax.f32 %v508, 0.0
    %v541 = vmax.f32 %v509, 0.0
    %v542 = vmax.f32 %v510, 0.0
    %v543 = vmax.f32 %v511, 0.0
    %v544 = vmax.f32 %v512, 0.0
    %v545 = vmax.f32 %v513, 0.0
    %v546 = vmax.f32 %v514, 0.0
    %v547 = vmax.f32 %v515, 0.0
    %v548 = vmax.f32 %v516, 0.0
    %v549 = vmax.f32 %v517, 0.0
    %v550 = vmax.f32 %v518, 0.0
    %v551 = vmax.f32 %v519, 0.0
    %v552 = vmax.f32 %v520, 0.0
    %v553 = vmax.f32 %v521, 0.0
    %v554 = vmax.f32 %v522, 0.0
    %v555 = vmax.f32 %v523, 0.0
    %v556 = vmax.f32 %v524, 0.0
    %v557 = vmax.f32 %v525, 0.0
    %v558 = vpack.c.bf16 %v528, %v526
    %v559 = vpack.c.bf16 %v529, %v527
    %v560 = vpack.c.bf16 %v532, %v530
    %v561 = vpack.c.bf16 %v533, %v531
    %v562 = vpack.c.bf16 %v536, %v534
    %v563 = vpack.c.bf16 %v537, %v535
    %v564 = vpack.c.bf16 %v540, %v538
    %v565 = vpack.c.bf16 %v541, %v539
    %v566 = vpack.c.bf16 %v544, %v542
    %v567 = vpack.c.bf16 %v545, %v543
    %v568 = vpack.c.bf16 %v548, %v546
    %v569 = vpack.c.bf16 %v549, %v547
    %v570 = vpack.c.bf16 %v552, %v550
    %v571 = vpack.c.bf16 %v553, %v551
    %v572 = vpack.c.bf16 %v556, %v554
    %v573 = vpack.c.bf16 %v557, %v555
    %s574 = scalar_lea.vmem %s2, 3
    %v575 = vld [vmem:[%s574] ss:$8 sm:$0x3]
    %v577 = vlaneseq
    %v578 = vshrl.u32 %v577, 7
    %v579 = vsub.s32 0, %v578
    %v580 = vrot.slane %v575, %v579
    %v581 = vlaneseq
    %v582 = vshrl.u32 %v581, 7
    %v583 = vsub.s32 1, %v582
    %v584 = vrot.slane %v575, %v583
    %v619 = vunpack.c.l.b16 %v58
    %v620 = vunpack.c.h.b16 %v58
    %v621 = vunpack.c.l.b16 %v59
    %v622 = vunpack.c.h.b16 %v59
    %v623 = vunpack.c.l.b16 %v60
    %v624 = vunpack.c.h.b16 %v60
    %v625 = vunpack.c.l.b16 %v61
    %v626 = vunpack.c.h.b16 %v61
    %v627 = vunpack.c.l.b16 %v62
    %v628 = vunpack.c.h.b16 %v62
    %v629 = vunpack.c.l.b16 %v63
    %v630 = vunpack.c.h.b16 %v63
    %v631 = vunpack.c.l.b16 %v64
    %v632 = vunpack.c.h.b16 %v64
    %v633 = vunpack.c.l.b16 %v65
    %v634 = vunpack.c.h.b16 %v65
    %v635 = vunpack.c.l.b16 %v66
    %v636 = vunpack.c.h.b16 %v66
    %v637 = vunpack.c.l.b16 %v67
    %v638 = vunpack.c.h.b16 %v67
    %v639 = vunpack.c.l.b16 %v68
    %v640 = vunpack.c.h.b16 %v68
    %v641 = vunpack.c.l.b16 %v69
    %v642 = vunpack.c.h.b16 %v69
    %v643 = vunpack.c.l.b16 %v70
    %v644 = vunpack.c.h.b16 %v70
    %v645 = vunpack.c.l.b16 %v71
    %v646 = vunpack.c.h.b16 %v71
    %v647 = vunpack.c.l.b16 %v72
    %v648 = vunpack.c.h.b16 %v72
    %v649 = vunpack.c.l.b16 %v73
    %v650 = vunpack.c.h.b16 %v73
    %v651 = vunpack.c.l.b16 %v74
    %v652 = vunpack.c.h.b16 %v74
    %v653 = vunpack.c.l.b16 %v75
    %v654 = vunpack.c.h.b16 %v75
    %v655 = vunpack.c.l.b16 %v76
    %v656 = vunpack.c.h.b16 %v76
    %v657 = vunpack.c.l.b16 %v77
    %v658 = vunpack.c.h.b16 %v77
    %v659 = vunpack.c.l.b16 %v78
    %v660 = vunpack.c.h.b16 %v78
    %v661 = vunpack.c.l.b16 %v79
    %v662 = vunpack.c.h.b16 %v79
    %v663 = vunpack.c.l.b16 %v80
    %v664 = vunpack.c.h.b16 %v80
    %v665 = vunpack.c.l.b16 %v81
    %v666 = vunpack.c.h.b16 %v81
    %v667 = vunpack.c.l.b16 %v82
    %v668 = vunpack.c.h.b16 %v82
    %v669 = vunpack.c.l.b16 %v83
    %v670 = vunpack.c.h.b16 %v83
    %v671 = vunpack.c.l.b16 %v84
    %v672 = vunpack.c.h.b16 %v84
    %v673 = vunpack.c.l.b16 %v85
    %v674 = vunpack.c.h.b16 %v85
    %v675 = vunpack.c.l.b16 %v86
    %v676 = vunpack.c.h.b16 %v86
    %v677 = vunpack.c.l.b16 %v87
    %v678 = vunpack.c.h.b16 %v87
    %v679 = vunpack.c.l.b16 %v88
    %v680 = vunpack.c.h.b16 %v88
    %v681 = vunpack.c.l.b16 %v89
    %v682 = vunpack.c.h.b16 %v89
    %v683 = vpack.c.b16 %v621, %v619
    %v684 = vpack.c.b16 %v622, %v620
    %v685 = vpack.c.b16 %v625, %v623
    %v686 = vpack.c.b16 %v626, %v624
    %v687 = vpack.c.b16 %v629, %v627
    %v688 = vpack.c.b16 %v630, %v628
    %v689 = vpack.c.b16 %v633, %v631
    %v690 = vpack.c.b16 %v634, %v632
    %v691 = vpack.c.b16 %v637, %v635
    %v692 = vpack.c.b16 %v638, %v636
    %v693 = vpack.c.b16 %v641, %v639
    %v694 = vpack.c.b16 %v642, %v640
    %v695 = vpack.c.b16 %v645, %v643
    %v696 = vpack.c.b16 %v646, %v644
    %v697 = vpack.c.b16 %v649, %v647
    %v698 = vpack.c.b16 %v650, %v648
    %v699 = vpack.c.b16 %v653, %v651
    %v700 = vpack.c.b16 %v654, %v652
    %v701 = vpack.c.b16 %v657, %v655
    %v702 = vpack.c.b16 %v658, %v656
    %v703 = vpack.c.b16 %v661, %v659
    %v704 = vpack.c.b16 %v662, %v660
    %v705 = vpack.c.b16 %v665, %v663
    %v706 = vpack.c.b16 %v666, %v664
    %v707 = vpack.c.b16 %v669, %v667
    %v708 = vpack.c.b16 %v670, %v668
    %v709 = vpack.c.b16 %v673, %v671
    %v710 = vpack.c.b16 %v674, %v672
    %v711 = vpack.c.b16 %v677, %v675
    %v712 = vpack.c.b16 %v678, %v676
    %v713 = vpack.c.b16 %v681, %v679
    %v714 = vpack.c.b16 %v682, %v680
    %747 = vmatprep.subr.bf16.mxu0 %v698
    %748 = vmatpush1.bf16.msra.mxu0 %v697
    %749 = vmatprep.subr.bf16.mxu0 %v696
    %750 = vmatpush1.bf16.msra.mxu0 %v695
    %751 = vmatprep.subr.bf16.mxu0 %v694
    %752 = vmatpush1.bf16.msra.mxu0 %v693
    %753 = vmatprep.subr.bf16.mxu0 %v692
    %754 = vmatpush1.bf16.msra.mxu0 %v691
    %755 = vmatprep.subr.bf16.mxu0 %v690
    %756 = vmatpush1.bf16.msra.mxu0 %v689
    %757 = vmatprep.subr.bf16.mxu0 %v688
    %758 = vmatpush1.bf16.msra.mxu0 %v687
    %759 = vmatprep.subr.bf16.mxu0 %v686
    %760 = vmatpush1.bf16.msra.mxu0 %v685
    %761 = vmatprep.subr.bf16.mxu0 %v684
    %762 = vmatpush1.bf16.msra.mxu0 %v683
    %763 = vmatprep.subr.bf16.mxu0 %v714
    %764 = vmatpush2.bf16.msra.mxu0 %v713
    %765 = vmatprep.subr.bf16.mxu0 %v712
    %766 = vmatpush2.bf16.msra.mxu0 %v711
    %767 = vmatprep.subr.bf16.mxu0 %v710
    %768 = vmatpush2.bf16.msra.mxu0 %v709
    %769 = vmatprep.subr.bf16.mxu0 %v708
    %770 = vmatpush2.bf16.msra.mxu0 %v707
    %771 = vmatprep.subr.bf16.mxu0 %v706
    %772 = vmatpush2.bf16.msra.mxu0 %v705
    %773 = vmatprep.subr.bf16.mxu0 %v704
    %774 = vmatpush2.bf16.msra.mxu0 %v703
    %775 = vmatprep.subr.bf16.mxu0 %v702
    %776 = vmatpush2.bf16.msra.mxu0 %v701
    %777 = vmatprep.subr.bf16.mxu0 %v700
    %778 = vmatpush2.bf16.msra.mxu0 %v699
    %779 = vmatprep.mubr.bf16.mxu0 %v559
    %780 = vmatmul.mubr.bf16.gmra.mxu0 %v558
    %v781 = vpop.f32.mrf.mxu0
    %v782 = vadd.f32 %v580, %v781
    %v783 = vpop.f32.mrf.mxu0
    %v784 = vadd.f32 %v584, %v783
    %v785 = vpop.f32.mrf.mxu0
    %v786 = vadd.f32 %v580, %v785
    %v787 = vpop.f32.mrf.mxu0
    %v788 = vadd.f32 %v584, %v787
    %789 = vmatprep.mubr.bf16.mxu0 %v561
    %790 = vmatmul.mubr.bf16.gmra.mxu0 %v560
    %v791 = vpop.f32.mrf.mxu0
    %v792 = vadd.f32 %v580, %v791
    %v793 = vpop.f32.mrf.mxu0
    %v794 = vadd.f32 %v584, %v793
    %v795 = vpop.f32.mrf.mxu0
    %v796 = vadd.f32 %v580, %v795
    %v797 = vpop.f32.mrf.mxu0
    %v798 = vadd.f32 %v584, %v797
    %799 = vmatprep.mubr.bf16.mxu0 %v563
    %800 = vmatmul.mubr.bf16.gmra.mxu0 %v562
    %v801 = vpop.f32.mrf.mxu0
    %v802 = vadd.f32 %v580, %v801
    %v803 = vpop.f32.mrf.mxu0
    %v804 = vadd.f32 %v584, %v803
    %v805 = vpop.f32.mrf.mxu0
    %v806 = vadd.f32 %v580, %v805
    %v807 = vpop.f32.mrf.mxu0
    %v808 = vadd.f32 %v584, %v807
    %809 = vmatprep.mubr.bf16.mxu0 %v565
    %810 = vmatmul.mubr.bf16.gmra.mxu0 %v564
    %v811 = vpop.f32.mrf.mxu0
    %v812 = vadd.f32 %v580, %v811
    %v813 = vpop.f32.mrf.mxu0
    %v814 = vadd.f32 %v584, %v813
    %v815 = vpop.f32.mrf.mxu0
    %v816 = vadd.f32 %v580, %v815
    %v817 = vpop.f32.mrf.mxu0
    %v818 = vadd.f32 %v584, %v817
    %819 = vmatprep.mubr.bf16.mxu0 %v567
    %820 = vmatmul.mubr.bf16.gmra.mxu0 %v566
    %v821 = vpop.f32.mrf.mxu0
    %v822 = vadd.f32 %v580, %v821
    %v823 = vpop.f32.mrf.mxu0
    %v824 = vadd.f32 %v584, %v823
    %v825 = vpop.f32.mrf.mxu0
    %v826 = vadd.f32 %v580, %v825
    %v827 = vpop.f32.mrf.mxu0
    %v828 = vadd.f32 %v584, %v827
    %829 = vmatprep.mubr.bf16.mxu0 %v569
    %830 = vmatmul.mubr.bf16.gmra.mxu0 %v568
    %v831 = vpop.f32.mrf.mxu0
    %v832 = vadd.f32 %v580, %v831
    %v833 = vpop.f32.mrf.mxu0
    %v834 = vadd.f32 %v584, %v833
    %v835 = vpop.f32.mrf.mxu0
    %v836 = vadd.f32 %v580, %v835
    %v837 = vpop.f32.mrf.mxu0
    %v838 = vadd.f32 %v584, %v837
    %839 = vmatprep.mubr.bf16.mxu0 %v571
    %840 = vmatmul.mubr.bf16.gmra.mxu0 %v570
    %v841 = vpop.f32.mrf.mxu0
    %v842 = vadd.f32 %v580, %v841
    %v843 = vpop.f32.mrf.mxu0
    %v844 = vadd.f32 %v584, %v843
    %v845 = vpop.f32.mrf.mxu0
    %v846 = vadd.f32 %v580, %v845
    %v847 = vpop.f32.mrf.mxu0
    %v848 = vadd.f32 %v584, %v847
    %849 = vmatprep.mubr.bf16.mxu0 %v573
    %850 = vmatmul.mubr.bf16.gmra.mxu0 %v572
    %v851 = vpop.f32.mrf.mxu0
    %v852 = vadd.f32 %v580, %v851
    %v853 = vpop.f32.mrf.mxu0
    %v854 = vadd.f32 %v584, %v853
    %v855 = vpop.f32.mrf.mxu0
    %v856 = vadd.f32 %v580, %v855
    %v857 = vpop.f32.mrf.mxu0
    %v858 = vadd.f32 %v584, %v857
    %859 = vdwg.mxu0
    %v860 = vmax.f32 %v782, 0.0
    %v861 = vmax.f32 %v784, 0.0
    %v862 = vmax.f32 %v786, 0.0
    %v863 = vmax.f32 %v788, 0.0
    %v864 = vmax.f32 %v792, 0.0
    %v865 = vmax.f32 %v794, 0.0
    %v866 = vmax.f32 %v796, 0.0
    %v867 = vmax.f32 %v798, 0.0
    %v868 = vmax.f32 %v802, 0.0
    %v869 = vmax.f32 %v804, 0.0
    %v870 = vmax.f32 %v806, 0.0
    %v871 = vmax.f32 %v808, 0.0
    %v872 = vmax.f32 %v812, 0.0
    %v873 = vmax.f32 %v814, 0.0
    %v874 = vmax.f32 %v816, 0.0
    %v875 = vmax.f32 %v818, 0.0
    %v876 = vmax.f32 %v822, 0.0
    %v877 = vmax.f32 %v824, 0.0
    %v878 = vmax.f32 %v826, 0.0
    %v879 = vmax.f32 %v828, 0.0
    %v880 = vmax.f32 %v832, 0.0
    %v881 = vmax.f32 %v834, 0.0
    %v882 = vmax.f32 %v836, 0.0
    %v883 = vmax.f32 %v838, 0.0
    %v884 = vmax.f32 %v842, 0.0
    %v885 = vmax.f32 %v844, 0.0
    %v886 = vmax.f32 %v846, 0.0
    %v887 = vmax.f32 %v848, 0.0
    %v888 = vmax.f32 %v852, 0.0
    %v889 = vmax.f32 %v854, 0.0
    %v890 = vmax.f32 %v856, 0.0
    %v891 = vmax.f32 %v858, 0.0
    %s892 = scalar_lea.vmem %s2, 4
    %v893 = vld [vmem:[%s892] ss:$8 sm:$0x3]
    %v895 = vlaneseq
    %v896 = vshrl.u32 %v895, 7
    %v897 = vsub.s32 0, %v896
    %v898 = vrot.slane %v893, %v897
    %v899 = vlaneseq
    %v900 = vshrl.u32 %v899, 7
    %v901 = vsub.s32 1, %v900
    %v902 = vrot.slane %v893, %v901
    %v905 = vpack.c.bf16 %v898, %v898
    %v906 = vpack.c.bf16 %v902, %v902
    %v907 = vpack.c.bf16 %v862, %v860
    %v908 = vpack.c.bf16 %v863, %v861
    %v909 = vpack.c.bf16 %v866, %v864
    %v910 = vpack.c.bf16 %v867, %v865
    %v911 = vpack.c.bf16 %v870, %v868
    %v912 = vpack.c.bf16 %v871, %v869
    %v913 = vpack.c.bf16 %v874, %v872
    %v914 = vpack.c.bf16 %v875, %v873
    %v915 = vpack.c.bf16 %v878, %v876
    %v916 = vpack.c.bf16 %v879, %v877
    %v917 = vpack.c.bf16 %v882, %v880
    %v918 = vpack.c.bf16 %v883, %v881
    %v919 = vpack.c.bf16 %v886, %v884
    %v920 = vpack.c.bf16 %v887, %v885
    %v921 = vpack.c.bf16 %v890, %v888
    %v922 = vpack.c.bf16 %v891, %v889
    %v923 = vld [vmem:[%s2 + $0x5] ss:$0 sm:$0xff]
    %925 = vset.pattern.permute.xlu0 0
    %926 = vperm.xlu0 %925, %v923
    %v927 = vpop.permute.xlu0 %926
    %929 = vmatprep.subr.bf16.mxu0 %v922
    %930 = vmatpush1.bf16.xpose.msra.mxu0 %v921
    %931 = vmatprep.subr.bf16.mxu0 %v920
    %932 = vmatpush1.bf16.xpose.msra.mxu0 %v919
    %933 = vmatprep.subr.bf16.mxu0 %v918
    %934 = vmatpush1.bf16.xpose.msra.mxu0 %v917
    %935 = vmatprep.subr.bf16.mxu0 %v916
    %936 = vmatpush1.bf16.xpose.msra.mxu0 %v915
    %937 = vmatprep.subr.bf16.mxu0 %v914
    %938 = vmatpush1.bf16.xpose.msra.mxu0 %v913
    %939 = vmatprep.subr.bf16.mxu0 %v912
    %940 = vmatpush1.bf16.xpose.msra.mxu0 %v911
    %941 = vmatprep.subr.bf16.mxu0 %v910
    %942 = vmatpush1.bf16.xpose.msra.mxu0 %v909
    %943 = vmatprep.subr.bf16.mxu0 %v908
    %944 = vmatpush1.bf16.xpose.msra.mxu0 %v907
    %945 = vmatprep.subr.bf16.mxu0 0
    %946 = vmatpush2.bf16.xpose.msra.mxu0 0
    %947 = vmatprep.subr.bf16.mxu0 0
    %948 = vmatpush2.bf16.xpose.msra.mxu0 0
    %949 = vmatprep.subr.bf16.mxu0 0
    %950 = vmatpush2.bf16.xpose.msra.mxu0 0
    %951 = vmatprep.subr.bf16.mxu0 0
    %952 = vmatpush2.bf16.xpose.msra.mxu0 0
    %953 = vmatprep.subr.bf16.mxu0 0
    %954 = vmatpush2.bf16.xpose.msra.mxu0 0
    %955 = vmatprep.subr.bf16.mxu0 0
    %956 = vmatpush2.bf16.xpose.msra.mxu0 0
    %957 = vmatprep.subr.bf16.mxu0 0
    %958 = vmatpush2.bf16.xpose.msra.mxu0 0
    %959 = vmatprep.subr.bf16.mxu0 0
    %960 = vmatpush2.bf16.xpose.msra.mxu0 0
    %961 = vmatprep.mubr.bf16.mxu0 %v906
    %962 = vmatmul.mubr.bf16.gmra.mxu0 %v905
    %v963 = vpop.f32.mrf.mxu0
    %v964 = vadd.f32 %v927, %v963
    %v965 = vpop.f32.mrf.mxu0
    %v966 = vpop.f32.mrf.mxu0
    %v967 = vpop.f32.mrf.mxu0
    %968 = vdwg.mxu0
    %969 = vst [vmem:[#allocation5] sm:$0x1] %v964
    // Predicated region
    $region18: #{tpu_custom_call.1} parent=1 // pred_check
      _
    $region19: #{tpu_custom_call.1} parent=1 // pred_check_branch
      %971 = sbr.rel (0) target = $region21
    $region20: #{tpu_custom_call.1} parent=1 // pred_region
      %s973 = ssub.s32 16, 16
      %974 = vsyncadd [#allocation4], %s973
      %s976 = sshll.u32 [#allocation5], 4
      %s977 = int_to_ptr.vmem [resolvable:$true] %s976
      %979 = dma.vmem_to_hbm [thread:$0]  %s977, 16, %s3, [#allocation4]
    $region21: #{tpu_custom_call.1} parent=1 // pred_fallthru
      _
    // Predicated region
    $region22: #{tpu_custom_call.1} parent=1 // pred_check
      _
    $region23: #{tpu_custom_call.1} parent=1 // pred_check_branch
      %981 = sbr.rel (0) target = $region25
    $region24: #{tpu_custom_call.1} parent=1 // pred_region
      %982 = dma.done [#allocation4], 16
    $region25: #{tpu_custom_call.1} parent=1 // pred_fallthru
      _
    %983 = vsyncpa [#allocation3], 1
    %984 = vsyncpa [#allocation4], 1

</llo_original>
